<compile_context>
chip_gen: v5e
topology: v5e:2x2
jax: 0.10.0
libtpu: 0.0.40
codegen_flags: <defaults>
</compile_context>

<pallas_src>
import functools

import jax
import jax.numpy as jnp
from jax import lax
from jax.experimental import pallas as pl
from jax.experimental.pallas import tpu as pltpu


# ---------------------------------------------------------------------------
# Mask construction (static glue, plain JAX) — matches get_mask + F.pad((1,0,1,0), 1.0)
# Built ONCE per (f_dim, t_dim); the scale is folded into the same constant.
# ---------------------------------------------------------------------------
def build_mask(f_dim: int, t_dim: int) -> jnp.ndarray:
    idx = jnp.arange(f_dim * t_dim)
    fi = idx // t_dim
    tj = idx % t_dim
    same_f = fi[:, None] == fi[None, :]
    same_t = tj[:, None] == tj[None, :]
    mask = (same_f | same_t).astype(jnp.float32)            # (f*t, f*t)
    # pad one row on top and one column on the left with 1.0 (cls token row/col)
    return jnp.pad(mask, ((1, 0), (1, 0)), constant_values=1.0)


# ---------------------------------------------------------------------------
# Fused Pallas kernel: one batch element per grid step, all heads per step.
#   mask_ref : (N, N)    == mask * scale (precomputed)
#   x_ref    : (N, C)
#   wqkv_ref : (3C, C)   (PyTorch nn.Linear weight layout: (out, in))
#   bqkv_ref : (1, 3C)
#   wproj_ref: (C, C)
#   bproj_ref: (1, C)
#   o_ref    : (N, C)
# ---------------------------------------------------------------------------
def _fused_masked_attn_kernel(mask_ref, x_ref, wqkv_ref, bqkv_ref,
                              wproj_ref, bproj_ref, o_ref,
                              *, num_heads, head_dim):
    xb = x_ref[...]                                          # (N, C) f32
    mask_scaled = mask_ref[...]                              # (N, N) f32, already * scale
    C = num_heads * head_dim

    # qkv linear: x @ W_qkv^T + b   (contract last dims; no in-kernel transpose)
    qkv = lax.dot_general(
        xb, wqkv_ref[...],
        dimension_numbers=(((1,), (1,)), ((), ())),
        preferred_element_type=jnp.float32,
    ) + bqkv_ref[...]                                        # (N, 3C)

    # Per-head masked attention; heads are static column slices of qkv.
    head_outs = []
    for h in range(num_heads):
        q = qkv[:, h * head_dim:(h + 1) * head_dim]                  # (N, Dh)
        k = qkv[:, C + h * head_dim:C + (h + 1) * head_dim]          # (N, Dh)
        v = qkv[:, 2 * C + h * head_dim:2 * C + (h + 1) * head_dim]  # (N, Dh)

        # scores = q @ k^T  (contract last dims directly on the MXU)
        s = lax.dot_general(
            q, k,
            dimension_numbers=(((1,), (1,)), ((), ())),
            preferred_element_type=jnp.float32,
        )
        # multiplicative mask then scale (fused: mask*scale), exactly as reference
        s = s * mask_scaled
        s_max = jnp.max(s, axis=-1, keepdims=True)
        e = jnp.exp(s - s_max)
        denom = jnp.sum(e, axis=-1, keepdims=True)
        p = e * pl.reciprocal(denom, approx=True)            # EUP vrcp, ~free
        head_outs.append(
            jnp.dot(p, v, preferred_element_type=jnp.float32)        # (N, Dh)
        )

    o = jnp.concatenate(head_outs, axis=-1)                  # (N, C) lane-dense

    # proj linear: o @ W_proj^T + b
    y = lax.dot_general(
        o, wproj_ref[...],
        dimension_numbers=(((1,), (1,)), ((), ())),
        preferred_element_type=jnp.float32,
    ) + bproj_ref[...]
    o_ref[...] = y.astype(o_ref.dtype)


def masked_attention_forward(x, params, mask_scaled, num_heads):
    """Fused qkv-linear -> masked attention -> proj-linear.  x: (B, N, C)."""
    B, N, C = x.shape
    Dh = C // num_heads
    kernel = functools.partial(_fused_masked_attn_kernel,
                               num_heads=num_heads, head_dim=Dh)
    # NOTE: for these shapes everything (x tile, weights, scores, mask) is far
    # below the scoped VMEM limit on all of v5e/v6e/v7x.  If N grows into the
    # hundreds+, switch the attention portion to a flash-style KV-block loop
    # (online softmax accumulator) instead of keeping (N,N) scores resident.
    return pl.pallas_call(
        kernel,
        out_shape=jax.ShapeDtypeStruct((B, N, C), x.dtype),
        grid=(B,),
        in_specs=[
            pl.BlockSpec((N, N), lambda b: (0, 0)),           # mask*scale (shared)
            pl.BlockSpec((None, N, C), lambda b: (b, 0, 0)),  # x, one batch per step
            pl.BlockSpec((3 * C, C), lambda b: (0, 0)),       # w_qkv
            pl.BlockSpec((1, 3 * C), lambda b: (0, 0)),       # b_qkv
            pl.BlockSpec((C, C), lambda b: (0, 0)),           # w_proj
            pl.BlockSpec((1, C), lambda b: (0, 0)),           # b_proj
        ],
        out_specs=pl.BlockSpec((None, N, C), lambda b: (b, 0, 0)),   # lane-dense (N, C)
        compiler_params=pltpu.CompilerParams(
            dimension_semantics=("parallel",)),               # megacore sharding on v7x
    )(mask_scaled, x,
      params["w_qkv"], params["b_qkv"].reshape(1, -1),
      params["w_proj"], params["b_proj"].reshape(1, -1))


# ---------------------------------------------------------------------------
# Pure-JAX reference for verification
# ---------------------------------------------------------------------------
def reference_forward(x, params, mask, scale, num_heads):
    B, N, C = x.shape
    Dh = C // num_heads
    qkv = x @ params["w_qkv"].T + params["b_qkv"]
    qkv = qkv.reshape(B, N, 3, num_heads, Dh).transpose(2, 0, 3, 1, 4)
    q, k, v = qkv[0], qkv[1], qkv[2]
    attn = jnp.einsum("bhnd,bhmd->bhnm", q, k) * mask[None, None] * scale
    attn = jax.nn.softmax(attn, axis=-1)
    o = jnp.einsum("bhnm,bhmd->bhnd", attn, v)
    o = o.transpose(0, 2, 1, 3).reshape(B, N, C)
    return o @ params["w_proj"].T + params["b_proj"]


if __name__ == "__main__":
    # Small shapes consistent with the module: N = f_dim*t_dim + 1 (cls token)
    B = 2
    num_heads = 4
    dim = 32                       # divisible by num_heads
    f_dim, t_dim = 4, 4
    N = f_dim * t_dim + 1          # 17
    head_dim = dim // num_heads
    scale = head_dim ** (-0.5)

    key = jax.random.PRNGKey(0)
    k1, k2, k3, k4, k5 = jax.random.split(key, 5)
    x = jax.random.normal(k1, (B, N, dim), dtype=jnp.float32)
    params = {
        "w_qkv": 0.05 * jax.random.normal(k2, (3 * dim, dim), dtype=jnp.float32),
        "b_qkv": 0.01 * jax.random.normal(k3, (3 * dim,), dtype=jnp.float32),
        "w_proj": 0.05 * jax.random.normal(k4, (dim, dim), dtype=jnp.float32),
        "b_proj": 0.01 * jax.random.normal(k5, (dim,), dtype=jnp.float32),
    }

    # Build the mask once (static given f_dim/t_dim) and fold in the scale.
    mask = build_mask(f_dim, t_dim)
    mask_scaled = (mask * scale).astype(jnp.float32)

    out = masked_attention_forward(x, params, mask_scaled, num_heads)
    out = jax.block_until_ready(out)

    ref = reference_forward(x, params, mask, scale, num_heads)
    assert out.shape == (B, N, dim)
    # Slightly relaxed tolerance: softmax denominator uses the approximate EUP
    # reciprocal (pl.reciprocal(approx=True)).
    assert jnp.allclose(out, ref, atol=2e-3, rtol=2e-3), "mismatch vs reference"

    print("KERNEL_OK")
</pallas_src>

<mosaic_0001>
module attributes {stable_mosaic.version = 11 : i64} {
  func.func @_fused_masked_attn_kernel(%arg0: i32, %arg1: memref<17x17xf32, #tpu.memory_space<vmem>>, %arg2: memref<1x17x32xf32, #tpu.memory_space<vmem>>, %arg3: memref<96x32xf32, #tpu.memory_space<vmem>>, %arg4: memref<1x96xf32, #tpu.memory_space<vmem>>, %arg5: memref<32x32xf32, #tpu.memory_space<vmem>>, %arg6: memref<1x32xf32, #tpu.memory_space<vmem>>, %arg7: memref<1x17x32xf32, #tpu.memory_space<vmem>>) attributes {dimension_semantics = [#tpu.dimension_semantics<parallel>], iteration_bounds = array<i64: 2>, scalar_prefetch = 0 : i64, scratch_operands = 0 : i64, tpu.core_type = #tpu.core_type<tc>, window_params = [{pipeline_mode = #tpu.pipeline_mode<synchronous>, transform_indices = @transform_0, window_bounds = array<i64: 17, 17>}, {transform_indices = @transform_1, window_bounds = array<i64: 1, 17, 32>}, {pipeline_mode = #tpu.pipeline_mode<synchronous>, transform_indices = @transform_2, window_bounds = array<i64: 96, 32>}, {pipeline_mode = #tpu.pipeline_mode<synchronous>, transform_indices = @transform_3, window_bounds = array<i64: 1, 96>}, {pipeline_mode = #tpu.pipeline_mode<synchronous>, transform_indices = @transform_4, window_bounds = array<i64: 32, 32>}, {pipeline_mode = #tpu.pipeline_mode<synchronous>, transform_indices = @transform_5, window_bounds = array<i64: 1, 32>}, {transform_indices = @transform_6, window_bounds = array<i64: 1, 17, 32>}]} {
    %c0 = arith.constant 0 : index
    %c0_0 = arith.constant 0 : index
    %c0_1 = arith.constant 0 : index
    %0 = vector.load %arg2[%c0, %c0_0, %c0_1] : memref<1x17x32xf32, #tpu.memory_space<vmem>>, vector<1x17x32xf32>
    %1 = vector.shape_cast %0 : vector<1x17x32xf32> to vector<17x32xf32>
    %c0_2 = arith.constant 0 : index
    %c0_3 = arith.constant 0 : index
    %2 = vector.load %arg1[%c0_2, %c0_3] : memref<17x17xf32, #tpu.memory_space<vmem>>, vector<17x17xf32>
    %c0_4 = arith.constant 0 : index
    %c0_5 = arith.constant 0 : index
    %3 = vector.load %arg3[%c0_4, %c0_5] : memref<96x32xf32, #tpu.memory_space<vmem>>, vector<96x32xf32>
    %cst = arith.constant dense<0.000000e+00> : vector<17x96xf32>
    %4 = tpu.matmul %1, %3, %cst {dimension_numbers = #tpu.dot_dimension_numbers<[1], [1], [0], [0], [0, 0, 1, 0], [], []>} : vector<17x32xf32>, vector<96x32xf32>, vector<17x96xf32> -> vector<17x96xf32>
    %c0_6 = arith.constant 0 : index
    %c0_7 = arith.constant 0 : index
    %5 = vector.load %arg4[%c0_6, %c0_7] : memref<1x96xf32, #tpu.memory_space<vmem>>, vector<1x96xf32>
    %6 = vector.broadcast %5 : vector<1x96xf32> to vector<17x96xf32>
    %7 = arith.addf %4, %6 : vector<17x96xf32>
    %8 = vector.extract_strided_slice %7 {offsets = [0, 0], sizes = [17, 8], strides = [1, 1]} : vector<17x96xf32> to vector<17x8xf32>
    %9 = vector.extract_strided_slice %7 {offsets = [0, 32], sizes = [17, 8], strides = [1, 1]} : vector<17x96xf32> to vector<17x8xf32>
    %10 = vector.extract_strided_slice %7 {offsets = [0, 64], sizes = [17, 8], strides = [1, 1]} : vector<17x96xf32> to vector<17x8xf32>
    %cst_8 = arith.constant dense<0.000000e+00> : vector<17x17xf32>
    %11 = tpu.matmul %8, %9, %cst_8 {dimension_numbers = #tpu.dot_dimension_numbers<[1], [1], [0], [0], [0, 0, 1, 0], [], []>} : vector<17x8xf32>, vector<17x8xf32>, vector<17x17xf32> -> vector<17x17xf32>
    %12 = arith.mulf %11, %2 : vector<17x17xf32>
    %cst_9 = arith.constant dense<0xFF800000> : vector<17xf32>
    %13 = vector.multi_reduction <maximumf>, %12, %cst_9 [1] : vector<17x17xf32> to vector<17xf32>
    %14 = vector.shape_cast %13 : vector<17xf32> to vector<17x1xf32>
    %15 = vector.broadcast %14 : vector<17x1xf32> to vector<17x17xf32>
    %16 = arith.subf %12, %15 : vector<17x17xf32>
    %17 = math.exp %16 : vector<17x17xf32>
    %cst_10 = arith.constant dense<0.000000e+00> : vector<17xf32>
    %18 = vector.multi_reduction <add>, %17, %cst_10 [1] : vector<17x17xf32> to vector<17xf32>
    %19 = vector.shape_cast %18 : vector<17xf32> to vector<17x1xf32>
    %20 = tpu.reciprocal %19 {approx = true} : vector<17x1xf32> -> vector<17x1xf32>
    %21 = vector.broadcast %20 : vector<17x1xf32> to vector<17x17xf32>
    %22 = arith.mulf %17, %21 : vector<17x17xf32>
    %cst_11 = arith.constant dense<0.000000e+00> : vector<17x8xf32>
    %23 = tpu.matmul %22, %10, %cst_11 {dimension_numbers = #tpu.dot_dimension_numbers<[1], [0], [0], [1], [0, 0, 1, 1], [], []>} : vector<17x17xf32>, vector<17x8xf32>, vector<17x8xf32> -> vector<17x8xf32>
    %24 = vector.extract_strided_slice %7 {offsets = [0, 8], sizes = [17, 8], strides = [1, 1]} : vector<17x96xf32> to vector<17x8xf32>
    %25 = vector.extract_strided_slice %7 {offsets = [0, 40], sizes = [17, 8], strides = [1, 1]} : vector<17x96xf32> to vector<17x8xf32>
    %26 = vector.extract_strided_slice %7 {offsets = [0, 72], sizes = [17, 8], strides = [1, 1]} : vector<17x96xf32> to vector<17x8xf32>
    %cst_12 = arith.constant dense<0.000000e+00> : vector<17x17xf32>
    %27 = tpu.matmul %24, %25, %cst_12 {dimension_numbers = #tpu.dot_dimension_numbers<[1], [1], [0], [0], [0, 0, 1, 0], [], []>} : vector<17x8xf32>, vector<17x8xf32>, vector<17x17xf32> -> vector<17x17xf32>
    %28 = arith.mulf %27, %2 : vector<17x17xf32>
    %cst_13 = arith.constant dense<0xFF800000> : vector<17xf32>
    %29 = vector.multi_reduction <maximumf>, %28, %cst_13 [1] : vector<17x17xf32> to vector<17xf32>
    %30 = vector.shape_cast %29 : vector<17xf32> to vector<17x1xf32>
    %31 = vector.broadcast %30 : vector<17x1xf32> to vector<17x17xf32>
    %32 = arith.subf %28, %31 : vector<17x17xf32>
    %33 = math.exp %32 : vector<17x17xf32>
    %cst_14 = arith.constant dense<0.000000e+00> : vector<17xf32>
    %34 = vector.multi_reduction <add>, %33, %cst_14 [1] : vector<17x17xf32> to vector<17xf32>
    %35 = vector.shape_cast %34 : vector<17xf32> to vector<17x1xf32>
    %36 = tpu.reciprocal %35 {approx = true} : vector<17x1xf32> -> vector<17x1xf32>
    %37 = vector.broadcast %36 : vector<17x1xf32> to vector<17x17xf32>
    %38 = arith.mulf %33, %37 : vector<17x17xf32>
    %cst_15 = arith.constant dense<0.000000e+00> : vector<17x8xf32>
    %39 = tpu.matmul %38, %26, %cst_15 {dimension_numbers = #tpu.dot_dimension_numbers<[1], [0], [0], [1], [0, 0, 1, 1], [], []>} : vector<17x17xf32>, vector<17x8xf32>, vector<17x8xf32> -> vector<17x8xf32>
    %40 = vector.extract_strided_slice %7 {offsets = [0, 16], sizes = [17, 8], strides = [1, 1]} : vector<17x96xf32> to vector<17x8xf32>
    %41 = vector.extract_strided_slice %7 {offsets = [0, 48], sizes = [17, 8], strides = [1, 1]} : vector<17x96xf32> to vector<17x8xf32>
    %42 = vector.extract_strided_slice %7 {offsets = [0, 80], sizes = [17, 8], strides = [1, 1]} : vector<17x96xf32> to vector<17x8xf32>
    %cst_16 = arith.constant dense<0.000000e+00> : vector<17x17xf32>
    %43 = tpu.matmul %40, %41, %cst_16 {dimension_numbers = #tpu.dot_dimension_numbers<[1], [1], [0], [0], [0, 0, 1, 0], [], []>} : vector<17x8xf32>, vector<17x8xf32>, vector<17x17xf32> -> vector<17x17xf32>
    %44 = arith.mulf %43, %2 : vector<17x17xf32>
    %cst_17 = arith.constant dense<0xFF800000> : vector<17xf32>
    %45 = vector.multi_reduction <maximumf>, %44, %cst_17 [1] : vector<17x17xf32> to vector<17xf32>
    %46 = vector.shape_cast %45 : vector<17xf32> to vector<17x1xf32>
    %47 = vector.broadcast %46 : vector<17x1xf32> to vector<17x17xf32>
    %48 = arith.subf %44, %47 : vector<17x17xf32>
    %49 = math.exp %48 : vector<17x17xf32>
    %cst_18 = arith.constant dense<0.000000e+00> : vector<17xf32>
    %50 = vector.multi_reduction <add>, %49, %cst_18 [1] : vector<17x17xf32> to vector<17xf32>
    %51 = vector.shape_cast %50 : vector<17xf32> to vector<17x1xf32>
    %52 = tpu.reciprocal %51 {approx = true} : vector<17x1xf32> -> vector<17x1xf32>
    %53 = vector.broadcast %52 : vector<17x1xf32> to vector<17x17xf32>
    %54 = arith.mulf %49, %53 : vector<17x17xf32>
    %cst_19 = arith.constant dense<0.000000e+00> : vector<17x8xf32>
    %55 = tpu.matmul %54, %42, %cst_19 {dimension_numbers = #tpu.dot_dimension_numbers<[1], [0], [0], [1], [0, 0, 1, 1], [], []>} : vector<17x17xf32>, vector<17x8xf32>, vector<17x8xf32> -> vector<17x8xf32>
    %56 = vector.extract_strided_slice %7 {offsets = [0, 24], sizes = [17, 8], strides = [1, 1]} : vector<17x96xf32> to vector<17x8xf32>
    %57 = vector.extract_strided_slice %7 {offsets = [0, 56], sizes = [17, 8], strides = [1, 1]} : vector<17x96xf32> to vector<17x8xf32>
    %58 = vector.extract_strided_slice %7 {offsets = [0, 88], sizes = [17, 8], strides = [1, 1]} : vector<17x96xf32> to vector<17x8xf32>
    %cst_20 = arith.constant dense<0.000000e+00> : vector<17x17xf32>
    %59 = tpu.matmul %56, %57, %cst_20 {dimension_numbers = #tpu.dot_dimension_numbers<[1], [1], [0], [0], [0, 0, 1, 0], [], []>} : vector<17x8xf32>, vector<17x8xf32>, vector<17x17xf32> -> vector<17x17xf32>
    %60 = arith.mulf %59, %2 : vector<17x17xf32>
    %cst_21 = arith.constant dense<0xFF800000> : vector<17xf32>
    %61 = vector.multi_reduction <maximumf>, %60, %cst_21 [1] : vector<17x17xf32> to vector<17xf32>
    %62 = vector.shape_cast %61 : vector<17xf32> to vector<17x1xf32>
    %63 = vector.broadcast %62 : vector<17x1xf32> to vector<17x17xf32>
    %64 = arith.subf %60, %63 : vector<17x17xf32>
    %65 = math.exp %64 : vector<17x17xf32>
    %cst_22 = arith.constant dense<0.000000e+00> : vector<17xf32>
    %66 = vector.multi_reduction <add>, %65, %cst_22 [1] : vector<17x17xf32> to vector<17xf32>
    %67 = vector.shape_cast %66 : vector<17xf32> to vector<17x1xf32>
    %68 = tpu.reciprocal %67 {approx = true} : vector<17x1xf32> -> vector<17x1xf32>
    %69 = vector.broadcast %68 : vector<17x1xf32> to vector<17x17xf32>
    %70 = arith.mulf %65, %69 : vector<17x17xf32>
    %cst_23 = arith.constant dense<0.000000e+00> : vector<17x8xf32>
    %71 = tpu.matmul %70, %58, %cst_23 {dimension_numbers = #tpu.dot_dimension_numbers<[1], [0], [0], [1], [0, 0, 1, 1], [], []>} : vector<17x17xf32>, vector<17x8xf32>, vector<17x8xf32> -> vector<17x8xf32>
    %72 = tpu.concatenate %23, %39, %55, %71 in 1 : vector<17x8xf32>, vector<17x8xf32>, vector<17x8xf32>, vector<17x8xf32> -> vector<17x32xf32>
    %c0_24 = arith.constant 0 : index
    %c0_25 = arith.constant 0 : index
    %73 = vector.load %arg5[%c0_24, %c0_25] : memref<32x32xf32, #tpu.memory_space<vmem>>, vector<32x32xf32>
    %cst_26 = arith.constant dense<0.000000e+00> : vector<17x32xf32>
    %74 = tpu.matmul %72, %73, %cst_26 {dimension_numbers = #tpu.dot_dimension_numbers<[1], [1], [0], [0], [0, 0, 1, 0], [], []>} : vector<17x32xf32>, vector<32x32xf32>, vector<17x32xf32> -> vector<17x32xf32>
    %c0_27 = arith.constant 0 : index
    %c0_28 = arith.constant 0 : index
    %75 = vector.load %arg6[%c0_27, %c0_28] : memref<1x32xf32, #tpu.memory_space<vmem>>, vector<1x32xf32>
    %76 = vector.broadcast %75 : vector<1x32xf32> to vector<17x32xf32>
    %77 = arith.addf %74, %76 : vector<17x32xf32>
    %c0_29 = arith.constant 0 : index
    %c0_30 = arith.constant 0 : index
    %c0_31 = arith.constant 0 : index
    %78 = vector.load %arg7[%c0_29, %c0_30, %c0_31] : memref<1x17x32xf32, #tpu.memory_space<vmem>>, vector<1x17x32xf32>
    %79 = vector.shape_cast %78 : vector<1x17x32xf32> to vector<17x32xf32>
    %80 = vector.shape_cast %77 : vector<17x32xf32> to vector<1x17x32xf32>
    tpu.vector_store %arg7[%c0_29, %c0_30, %c0_31], %80 {strides = array<i32>} : memref<1x17x32xf32, #tpu.memory_space<vmem>>, vector<1x17x32xf32>,
    return
  }
  func.func @transform_0(%arg0: i32) -> (i32, i32) {
    %c0_i32 = arith.constant 0 : i32
    %c0_i32_0 = arith.constant 0 : i32
    %c0_i32_1 = arith.constant 0 : i32
    return %c0_i32, %c0_i32_0 : i32, i32
  }
  func.func @transform_1(%arg0: i32) -> (i32, i32, i32) {
    %c0_i32 = arith.constant 0 : i32
    %c0_i32_0 = arith.constant 0 : i32
    %c0_i32_1 = arith.constant 0 : i32
    return %arg0, %c0_i32, %c0_i32_0 : i32, i32, i32
  }
  func.func @transform_2(%arg0: i32) -> (i32, i32) {
    %c0_i32 = arith.constant 0 : i32
    %c0_i32_0 = arith.constant 0 : i32
    %c0_i32_1 = arith.constant 0 : i32
    return %c0_i32, %c0_i32_0 : i32, i32
  }
  func.func @transform_3(%arg0: i32) -> (i32, i32) {
    %c0_i32 = arith.constant 0 : i32
    %c0_i32_0 = arith.constant 0 : i32
    %c0_i32_1 = arith.constant 0 : i32
    return %c0_i32, %c0_i32_0 : i32, i32
  }
  func.func @transform_4(%arg0: i32) -> (i32, i32) {
    %c0_i32 = arith.constant 0 : i32
    %c0_i32_0 = arith.constant 0 : i32
    %c0_i32_1 = arith.constant 0 : i32
    return %c0_i32, %c0_i32_0 : i32, i32
  }
  func.func @transform_5(%arg0: i32) -> (i32, i32) {
    %c0_i32 = arith.constant 0 : i32
    %c0_i32_0 = arith.constant 0 : i32
    %c0_i32_1 = arith.constant 0 : i32
    return %c0_i32, %c0_i32_0 : i32, i32
  }
  func.func @transform_6(%arg0: i32) -> (i32, i32, i32) {
    %c0_i32 = arith.constant 0 : i32
    %c0_i32_0 = arith.constant 0 : i32
    %c0_i32_1 = arith.constant 0 : i32
    return %arg0, %c0_i32, %c0_i32_0 : i32, i32, i32
  }
}

</mosaic_0001>

<llo_original>
// kernel: tpu_custom_call.1
$region0: #{tpu_custom_call.1}
  #allocation0 [shape = 'u32[]', space=smem, size = 0x4, offset = 0x4, fixed_abs, tag = 'smem constant byte address 0x4 - core index']
  #allocation1 [shape = 'u32[72,128]{1,0:T(1,128)}', space=vmem, size = 0x9000, scoped, tag = 'internal scratch']
  %s0 = inlined_call_operand.vmem [shape: f32[17,17], index: 0, kind: input, shape index: {}]
  %s1 = inlined_call_operand.vmem [shape: f32[2,17,32], index: 1, kind: input, shape index: {}]
  %s2 = inlined_call_operand.vmem [shape: f32[96,32], index: 2, kind: input, shape index: {}]
  %s3 = inlined_call_operand.vmem [shape: f32[1,96], index: 3, kind: input, shape index: {}]
  %s4 = inlined_call_operand.vmem [shape: f32[32,32], index: 4, kind: input, shape index: {}]
  %s5 = inlined_call_operand.vmem [shape: f32[1,32], index: 5, kind: input, shape index: {}]
  %s6 = inlined_call_operand.vmem [shape: f32[2,17,32], index: 6, kind: output, shape index: {}]
  %s7 = sld [smem:[#allocation0]]
  $region57: #{tpu_custom_call.1} parent=0
    _
  %s9 = ssub.s32 1, %s7
  %s10 = scalar_select 0, %s9, %s7
  loop: start=0, step=1, limit=4
  $region2: #{tpu_custom_call.1} parent=0 // loop_pre_header
    _
  $region3: #{tpu_custom_call.1} parent=0 // loop_header
    %s12 = sphi 0, %s16
    %p13 = scmp.ge.s32.totalorder %s12, 4
    %s20 = sphi 0, %s20
    %s22 = sphi 0, %s20
    %s23 = sphi 0, %s22
    %s37 = sphi 0, %s23
    %s43 = sphi 0, %s45
    %s46 = sphi 0, %s43
    %s47 = sphi 0, %s46
    %s63 = sphi 0, %s47
    %s67 = sphi 0, %s67
    %s69 = sphi 0, %s67
    %s70 = sphi 0, %s69
    %s84 = sphi 0, %s70
    %s88 = sphi 0, %s88
    %s90 = sphi 0, %s88
    %s91 = sphi 0, %s90
    %s105 = sphi 0, %s91
    %s109 = sphi 0, %s109
    %s111 = sphi 0, %s109
    %s112 = sphi 0, %s111
    %s126 = sphi 0, %s112
    %s130 = sphi 0, %s130
    %s132 = sphi 0, %s130
    %s133 = sphi 0, %s132
    %s147 = sphi 0, %s133
    %s153 = sphi 0, %s155
    %s156 = sphi 0, %s153
    %s157 = sphi 0, %s156
    %s173 = sphi 0, %s157
  $region4: #{tpu_custom_call.1} parent=0 // loop_header_branch
    %15 = sbr.rel (%p13) target = $region8
  $region5: #{tpu_custom_call.1} parent=0 // loop_body
    %s17 = ssub.s32 %s12, 1
    %s18 = ssub.s32 %s12, 2
    %s19 = sadd.s32 %s12, 1
    %s21 = sadd.s32 %s20, 1
    %p24 = scmp.eq.s32.totalorder %s12, 1
    %p25 = scmp.ne.s32.totalorder %s20, %s22
    %p26 = scmp.eq.s32.totalorder %s12, 0
    %p27 = por %p25, %p26
    %p28 = scmp.ne.s32.totalorder %s20, %s22
    %p29 = scmp.eq.s32.totalorder %s17, 1
    %p30 = por %p28, %p29
    %p31 = scmp.ne.s32.totalorder %s22, %s23
    %p32 = scmp.eq.s32.totalorder %s17, 0
    %p33 = por %p31, %p32
    %p34 = scmp.ne.s32.totalorder %s22, %s23
    %p35 = scmp.eq.s32.totalorder %s18, 1
    %p36 = por %p34, %p35
    %p38 = scmp.ne.s32.totalorder %s23, %s37
    %p39 = scmp.eq.s32.totalorder %s18, 0
    %p40 = por %p38, %p39
    %s41 = ssub.s32 %s12, %s19
    %p42 = scmp.eq.s32.totalorder %s41, 0
    %s44 = sadd.s32 %s43, 1
    %s45 = scalar_select %p42, %s43, %s44
    %p48 = pneg %p42
    %p49 = scmp.eq.s32.totalorder %s12, 1
    %p50 = por %p48, %p49
    %p51 = scmp.ne.s32.totalorder %s43, %s46
    %p52 = scmp.eq.s32.totalorder %s12, 0
    %p53 = por %p51, %p52
    %p54 = scmp.ne.s32.totalorder %s43, %s46
    %p55 = scmp.eq.s32.totalorder %s17, 1
    %p56 = por %p54, %p55
    %p57 = scmp.ne.s32.totalorder %s46, %s47
    %p58 = scmp.eq.s32.totalorder %s17, 0
    %p59 = por %p57, %p58
    %p60 = scmp.ne.s32.totalorder %s46, %s47
    %p61 = scmp.eq.s32.totalorder %s18, 1
    %p62 = por %p60, %p61
    %p64 = scmp.ne.s32.totalorder %s47, %s63
    %p65 = scmp.eq.s32.totalorder %s18, 0
    %p66 = por %p64, %p65
    %s68 = sadd.s32 %s67, 1
    %p71 = scmp.eq.s32.totalorder %s12, 1
    %p72 = scmp.ne.s32.totalorder %s67, %s69
    %p73 = scmp.eq.s32.totalorder %s12, 0
    %p74 = por %p72, %p73
    %p75 = scmp.ne.s32.totalorder %s67, %s69
    %p76 = scmp.eq.s32.totalorder %s17, 1
    %p77 = por %p75, %p76
    %p78 = scmp.ne.s32.totalorder %s69, %s70
    %p79 = scmp.eq.s32.totalorder %s17, 0
    %p80 = por %p78, %p79
    %p81 = scmp.ne.s32.totalorder %s69, %s70
    %p82 = scmp.eq.s32.totalorder %s18, 1
    %p83 = por %p81, %p82
    %p85 = scmp.ne.s32.totalorder %s70, %s84
    %p86 = scmp.eq.s32.totalorder %s18, 0
    %p87 = por %p85, %p86
    %s89 = sadd.s32 %s88, 1
    %p92 = scmp.eq.s32.totalorder %s12, 1
    %p93 = scmp.ne.s32.totalorder %s88, %s90
    %p94 = scmp.eq.s32.totalorder %s12, 0
    %p95 = por %p93, %p94
    %p96 = scmp.ne.s32.totalorder %s88, %s90
    %p97 = scmp.eq.s32.totalorder %s17, 1
    %p98 = por %p96, %p97
    %p99 = scmp.ne.s32.totalorder %s90, %s91
    %p100 = scmp.eq.s32.totalorder %s17, 0
    %p101 = por %p99, %p100
    %p102 = scmp.ne.s32.totalorder %s90, %s91
    %p103 = scmp.eq.s32.totalorder %s18, 1
    %p104 = por %p102, %p103
    %p106 = scmp.ne.s32.totalorder %s91, %s105
    %p107 = scmp.eq.s32.totalorder %s18, 0
    %p108 = por %p106, %p107
    %s110 = sadd.s32 %s109, 1
    %p113 = scmp.eq.s32.totalorder %s12, 1
    %p114 = scmp.ne.s32.totalorder %s109, %s111
    %p115 = scmp.eq.s32.totalorder %s12, 0
    %p116 = por %p114, %p115
    %p117 = scmp.ne.s32.totalorder %s109, %s111
    %p118 = scmp.eq.s32.totalorder %s17, 1
    %p119 = por %p117, %p118
    %p120 = scmp.ne.s32.totalorder %s111, %s112
    %p121 = scmp.eq.s32.totalorder %s17, 0
    %p122 = por %p120, %p121
    %p123 = scmp.ne.s32.totalorder %s111, %s112
    %p124 = scmp.eq.s32.totalorder %s18, 1
    %p125 = por %p123, %p124
    %p127 = scmp.ne.s32.totalorder %s112, %s126
    %p128 = scmp.eq.s32.totalorder %s18, 0
    %p129 = por %p127, %p128
    %s131 = sadd.s32 %s130, 1
    %p134 = scmp.eq.s32.totalorder %s12, 1
    %p135 = scmp.ne.s32.totalorder %s130, %s132
    %p136 = scmp.eq.s32.totalorder %s12, 0
    %p137 = por %p135, %p136
    %p138 = scmp.ne.s32.totalorder %s130, %s132
    %p139 = scmp.eq.s32.totalorder %s17, 1
    %p140 = por %p138, %p139
    %p141 = scmp.ne.s32.totalorder %s132, %s133
    %p142 = scmp.eq.s32.totalorder %s17, 0
    %p143 = por %p141, %p142
    %p144 = scmp.ne.s32.totalorder %s132, %s133
    %p145 = scmp.eq.s32.totalorder %s18, 1
    %p146 = por %p144, %p145
    %p148 = scmp.ne.s32.totalorder %s133, %s147
    %p149 = scmp.eq.s32.totalorder %s18, 0
    %p150 = por %p148, %p149
    %s151 = ssub.s32 %s12, %s19
    %p152 = scmp.eq.s32.totalorder %s151, 0
    %s154 = sadd.s32 %s153, 1
    %s155 = scalar_select %p152, %s153, %s154
    %p158 = pneg %p152
    %p159 = scmp.eq.s32.totalorder %s12, 1
    %p160 = por %p158, %p159
    %p161 = scmp.ne.s32.totalorder %s153, %s156
    %p162 = scmp.eq.s32.totalorder %s12, 0
    %p163 = por %p161, %p162
    %p164 = scmp.ne.s32.totalorder %s153, %s156
    %p165 = scmp.eq.s32.totalorder %s17, 1
    %p166 = por %p164, %p165
    %p167 = scmp.ne.s32.totalorder %s156, %s157
    %p168 = scmp.eq.s32.totalorder %s17, 0
    %p169 = por %p167, %p168
    %p170 = scmp.ne.s32.totalorder %s156, %s157
    %p171 = scmp.eq.s32.totalorder %s18, 1
    %p172 = por %p170, %p171
    %p174 = scmp.ne.s32.totalorder %s157, %s173
    %p175 = scmp.eq.s32.totalorder %s18, 0
    %p176 = por %p174, %p175
    %p177 = scmp.le.s32.totalorder 1, %s12
    %p178 = scmp.lt.s32.totalorder %s12, 3
    %p179 = pnand %p177, %p178
    %p180 = pneg %p179
    // Predicated region
    $region9: #{tpu_custom_call.1} parent=5 // pred_check
      _
    $region10: #{tpu_custom_call.1} parent=5 // pred_check_branch
      %182 = sbr.rel (%p179) target = $region12
    $region11: #{tpu_custom_call.1} parent=5 // pred_region
      %s183 = ssub.s32 %s12, 1
      // Predicated region
      $region13: #{tpu_custom_call.1} parent=11 // pred_check
        %p184 = pneg %p33
      $region14: #{tpu_custom_call.1} parent=11 // pred_check_branch
        %186 = sbr.rel (%p184) target = $region16
      $region15: #{tpu_custom_call.1} parent=11 // pred_region
        _
      $region16: #{tpu_custom_call.1} parent=11 // pred_fallthru
        _
      // Predicated region
      $region17: #{tpu_custom_call.1} parent=11 // pred_check
        %p187 = pneg %p80
      $region18: #{tpu_custom_call.1} parent=11 // pred_check_branch
        %189 = sbr.rel (%p187) target = $region20
      $region19: #{tpu_custom_call.1} parent=11 // pred_region
        _
      $region20: #{tpu_custom_call.1} parent=11 // pred_fallthru
        _
      // Predicated region
      $region21: #{tpu_custom_call.1} parent=11 // pred_check
        %p190 = pneg %p101
      $region22: #{tpu_custom_call.1} parent=11 // pred_check_branch
        %192 = sbr.rel (%p190) target = $region24
      $region23: #{tpu_custom_call.1} parent=11 // pred_region
        _
      $region24: #{tpu_custom_call.1} parent=11 // pred_fallthru
        _
      // Predicated region
      $region25: #{tpu_custom_call.1} parent=11 // pred_check
        %p193 = pneg %p122
      $region26: #{tpu_custom_call.1} parent=11 // pred_check_branch
        %195 = sbr.rel (%p193) target = $region28
      $region27: #{tpu_custom_call.1} parent=11 // pred_region
        _
      $region28: #{tpu_custom_call.1} parent=11 // pred_fallthru
        _
      // Predicated region
      $region29: #{tpu_custom_call.1} parent=11 // pred_check
        %p196 = pneg %p143
      $region30: #{tpu_custom_call.1} parent=11 // pred_check_branch
        %198 = sbr.rel (%p196) target = $region32
      $region31: #{tpu_custom_call.1} parent=11 // pred_region
        _
      $region32: #{tpu_custom_call.1} parent=11 // pred_fallthru
        _
    $region12: #{tpu_custom_call.1} parent=5 // pred_fallthru
      _
    %p199 = scmp.lt.s32.totalorder %s12, 2
    // Predicated region
    $region33: #{tpu_custom_call.1} parent=5 // pred_check
      %p200 = pneg %p199
    $region34: #{tpu_custom_call.1} parent=5 // pred_check_branch
      %202 = sbr.rel (%p200) target = $region36
    $region35: #{tpu_custom_call.1} parent=5 // pred_region
      // Predicated region
      $region37: #{tpu_custom_call.1} parent=35 // pred_check
        %p203 = pneg %p53
      $region38: #{tpu_custom_call.1} parent=35 // pred_check_branch
        %205 = sbr.rel (%p203) target = $region40
      $region39: #{tpu_custom_call.1} parent=35 // pred_region
        %p206 = scmp.lt.s32.totalorder %s12, 1
        %s207 = scalar_select %p206, %s12, 1
        %s208 = smul.addr %s207, 3
        %s209 = smul.addr %s208, 8
        %s210 = scalar_lea.vmem %s1, %s209
      $region40: #{tpu_custom_call.1} parent=35 // pred_fallthru
        _
    $region36: #{tpu_custom_call.1} parent=5 // pred_fallthru
      _
    %p211 = scmp.le.s32.totalorder 1, %s12
    %p212 = scmp.lt.s32.totalorder %s12, 3
    %p213 = pnand %p211, %p212
    %p214 = pneg %p213
    // Predicated region
    $region41: #{tpu_custom_call.1} parent=5 // pred_check
      _
    $region42: #{tpu_custom_call.1} parent=5 // pred_check_branch
      %216 = sbr.rel (%p213) target = $region44
    $region43: #{tpu_custom_call.1} parent=5 // pred_region
      %s217 = ssub.s32 %s12, 1
      %p218 = pneg %p33
      %p219 = pneg %p30
      %p220 = scmp.lt.s32.totalorder %s17, 1
      %s221 = scalar_select %p220, %s17, 1
      %s222 = smul.addr %s221, 3
      %s223 = smul.addr %s222, 8
      %s224 = scalar_lea.vmem %s1, %s223
      %p225 = pneg %p59
      %p226 = pneg %p56
      %p227 = pneg %p80
      %p228 = pneg %p77
      %p229 = pneg %p101
      %p230 = pneg %p98
      %p231 = pneg %p122
      %p232 = pneg %p119
      %p233 = pneg %p143
      %p234 = pneg %p140
      %p235 = pneg %p169
      %p236 = pneg %p166
      %p237 = scmp.lt.s32.totalorder %s17, 1
      %s238 = scalar_select %p237, %s17, 1
      %s239 = smul.addr %s238, 3
      %s240 = smul.addr %s239, 8
      %s241 = scalar_lea.vmem %s6, %s240
      %p242 = scmp.lt.s32.totalorder %s17, 1
      %s243 = scalar_select %p242, %s17, 1
      %s244 = smul.addr %s243, 3
      %s245 = smul.addr %s244, 8
      %s246 = scalar_lea.vmem %s1, %s245
      %p247 = scmp.lt.s32.totalorder %s17, 1
      %s248 = scalar_select %p247, %s17, 1
      %s249 = smul.addr %s248, 3
      %s250 = smul.addr %s249, 8
      %s251 = scalar_lea.vmem %s6, %s250
      %v252 = vld [vmem:[%s246] sm:$0xff]
      %v253 = vld [vmem:[%s246 + $0x8] sm:$0xff]
      %v254 = vld [vmem:[%s246 + $0x10] sm:$0x1]
      %v255 = vld [vmem:[%s0] sm:$0xff]
      %v256 = vld [vmem:[%s0 + $0x8] sm:$0xff]
      %v257 = vld [vmem:[%s0 + $0x10] sm:$0x1]
      %v258 = vld [vmem:[%s2] sm:$0xff]
      %v259 = vld [vmem:[%s2 + $0x8] sm:$0xff]
      %v260 = vld [vmem:[%s2 + $0x10] sm:$0xff]
      %v261 = vld [vmem:[%s2 + $0x18] sm:$0xff]
      %v262 = vld [vmem:[%s2 + $0x20] sm:$0xff]
      %v263 = vld [vmem:[%s2 + $0x28] sm:$0xff]
      %v264 = vld [vmem:[%s2 + $0x30] sm:$0xff]
      %v265 = vld [vmem:[%s2 + $0x38] sm:$0xff]
      %v266 = vld [vmem:[%s2 + $0x40] sm:$0xff]
      %v267 = vld [vmem:[%s2 + $0x48] sm:$0xff]
      %v268 = vld [vmem:[%s2 + $0x50] sm:$0xff]
      %v269 = vld [vmem:[%s2 + $0x58] sm:$0xff]
      %v270 = vld [vmem:[%s3] sm:$0x1]
      %v272 = vperm.slane %v270, 0
      %vm274 = vcmask 261120
      %v276 = vsel %vm274, %v252, 0
      %v279 = vsel %vm274, %v253, 0
      %v282 = vsel %vm274, %v254, 0
      %v285 = vsel %vm274, %v258, 0
      %v288 = vsel %vm274, %v259, 0
      %v291 = vsel %vm274, %v260, 0
      %v294 = vsel %vm274, %v261, 0
      %v297 = vsel %vm274, %v262, 0
      %v300 = vsel %vm274, %v263, 0
      %v303 = vsel %vm274, %v264, 0
      %v306 = vsel %vm274, %v265, 0
      %v309 = vsel %vm274, %v266, 0
      %v312 = vsel %vm274, %v267, 0
      %v315 = vsel %vm274, %v268, 0
      %v318 = vsel %vm274, %v269, 0
      %320 = vmatpush.xpose.msra.mxu0 0.0
      %321 = vmatpush.xpose.msra.mxu0 0.0
      %322 = vmatpush.xpose.msra.mxu0 0.0
      %323 = vmatpush.xpose.msra.mxu0 0.0
      %324 = vmatpush.xpose.msra.mxu0 %v318
      %325 = vmatpush.xpose.msra.mxu0 %v315
      %326 = vmatpush.xpose.msra.mxu0 %v312
      %327 = vmatpush.xpose.msra.mxu0 %v309
      %328 = vmatpush.xpose.msra.mxu0 %v306
      %329 = vmatpush.xpose.msra.mxu0 %v303
      %330 = vmatpush.xpose.msra.mxu0 %v300
      %331 = vmatpush.xpose.msra.mxu0 %v297
      %332 = vmatpush.xpose.msra.mxu0 %v294
      %333 = vmatpush.xpose.msra.mxu0 %v291
      %334 = vmatpush.xpose.msra.mxu0 %v288
      %335 = vmatpush.xpose.msra.mxu0 %v285
      %336 = vmatmul.f32.gmra.mxu0 %v276
      %v337 = vpop.f32.mrf.mxu0
      %v338 = vadd.f32 %v272, %v337
      %339 = vmatmul.f32.gmra.mxu0 %v279
      %v340 = vpop.f32.mrf.mxu0
      %v341 = vadd.f32 %v272, %v340
      %342 = vmatmul.f32.gmra.mxu0 %v282
      %v343 = vpop.f32.mrf.mxu0
      %v344 = vadd.f32 %v272, %v343
      %345 = vdwg.mxu0
      %349 = vrot.lane.b32.xlu0 %v338, 96
      %v350 = vpop.permute.xlu0 %349
      %351 = vrot.lane.b32.xlu0 %v341, 96
      %v352 = vpop.permute.xlu0 %351
      %353 = vrot.lane.b32.xlu0 %v344, 96
      %v354 = vpop.permute.xlu0 %353
      %vm355 = vcmask 64512
      %v356 = vsel %vm355, %v338, 0
      %v358 = vsel %vm355, %v341, 0
      %v360 = vsel %vm355, %v344, 0
      %v362 = vsel %vm355, %v350, 0
      %v364 = vsel %vm355, %v352, 0
      %v366 = vsel %vm355, %v354, 0
      %368 = vmatpush.xpose.msra.mxu0 0.0
      %369 = vmatpush.xpose.msra.mxu0 0.0
      %370 = vmatpush.xpose.msra.mxu0 0.0
      %371 = vmatpush.xpose.msra.mxu0 0.0
      %372 = vmatpush.xpose.msra.mxu0 0.0
      %373 = vmatpush.xpose.msra.mxu0 0.0
      %374 = vmatpush.xpose.msra.mxu0 0.0
      %375 = vmatpush.xpose.msra.mxu0 0.0
      %376 = vmatpush.xpose.msra.mxu0 0.0
      %377 = vmatpush.xpose.msra.mxu0 0.0
      %378 = vmatpush.xpose.msra.mxu0 0.0
      %379 = vmatpush.xpose.msra.mxu0 0.0
      %380 = vmatpush.xpose.msra.mxu0 0.0
      %381 = vmatpush.xpose.msra.mxu0 %v366
      %382 = vmatpush.xpose.msra.mxu0 %v364
      %383 = vmatpush.xpose.msra.mxu0 %v362
      %384 = vmatmul.f32.gmra.mxu0 %v356
      %v385 = vpop.f32.mrf.mxu0
      %v386 = vadd.f32 0.0, %v385
      %387 = vmatmul.f32.gmra.mxu0 %v358
      %v388 = vpop.f32.mrf.mxu0
      %v389 = vadd.f32 0.0, %v388
      %390 = vmatmul.f32.gmra.mxu0 %v360
      %v391 = vpop.f32.mrf.mxu0
      %v392 = vadd.f32 0.0, %v391
      %393 = vdwg.mxu0
      %v394 = vmul.f32 %v386, %v255
      %v395 = vmul.f32 %v389, %v256
      %v396 = vmul.f32 %v392, %v257
      %vm397 = vcmask 138240
      %v398 = vsel %vm397, %v394, -inf
      %399 = vmax.xlane.f32.xlu0 %v398
      %v400 = vpop.xlane.xlu0 %399
      %v401 = vsel %vm397, %v395, -inf
      %402 = vmax.xlane.f32.xlu0 %v401
      %v403 = vpop.xlane.xlu0 %402
      %vm404 = vcmask 131072
      %v405 = vsel %vm404, %v396, -inf
      %406 = vmax.xlane.f32.xlu0 %v405
      %v407 = vpop.xlane.xlu0 %406
      %v408 = vsub.f32 %v394, %v400
      %v409 = vsub.f32 %v395, %v403
      %v410 = vsub.f32 %v396, %v407
      %v411 = vmul.f32 %v408, 1.442695
      %v412 = vpow.pop %v411
      %v413 = vmul.f32 %v409, 1.442695
      %v414 = vpow.pop %v413
      %v415 = vmul.f32 %v410, 1.442695
      %v416 = vpow.pop %v415
      %v417 = vsel %vm397, %v412, 0.0
      %418 = vadd.xlane.f32.xlu0 %v417
      %v419 = vpop.xlane.xlu0 %418
      %v420 = vsel %vm397, %v414, 0.0
      %421 = vadd.xlane.f32.xlu0 %v420
      %v422 = vpop.xlane.xlu0 %421
      %v423 = vsel %vm404, %v416, 0.0
      %424 = vadd.xlane.f32.xlu0 %v423
      %v425 = vpop.xlane.xlu0 %424
      %v426 = vrcp.pop %v419
      %v427 = vrcp.pop %v422
      %v428 = vrcp.pop %v425
      %v429 = vmul.f32 %v412, %v426
      %v430 = vmul.f32 %v414, %v427
      %v431 = vmul.f32 %v416, %v428
      %432 = vrot.lane.b32.xlu0 %v338, 64
      %v433 = vpop.permute.xlu0 %432
      %434 = vrot.lane.b32.xlu0 %v341, 64
      %v435 = vpop.permute.xlu0 %434
      %436 = vrot.lane.b32.xlu0 %v344, 64
      %v437 = vpop.permute.xlu0 %436
      %v441 = vsel %vm397, %v429, 0
      %v444 = vsel %vm397, %v430, 0
      %v447 = vsel %vm397, %v431, 0
      %vm449 = vcmask 1040384
      %v450 = vsel %vm449, %v437, 0
      %452 = vmatpush.msra.mxu0 0.0
      %453 = vmatpush.msra.mxu0 0.0
      %454 = vmatpush.msra.mxu0 0.0
      %455 = vmatpush.msra.mxu0 0.0
      %456 = vmatpush.msra.mxu0 0.0
      %457 = vmatpush.msra.mxu0 0.0
      %458 = vmatpush.msra.mxu0 0.0
      %459 = vmatpush.msra.mxu0 0.0
      %460 = vmatpush.msra.mxu0 0.0
      %461 = vmatpush.msra.mxu0 0.0
      %462 = vmatpush.msra.mxu0 0.0
      %463 = vmatpush.msra.mxu0 0.0
      %464 = vmatpush.msra.mxu0 0.0
      %465 = vmatpush.msra.mxu0 %v450
      %466 = vmatpush.msra.mxu0 %v435
      %467 = vmatpush.msra.mxu0 %v433
      %468 = vmatmul.f32.gmra.mxu0 %v441
      %v469 = vpop.f32.mrf.mxu0
      %v470 = vadd.f32 0.0, %v469
      %471 = vmatmul.f32.gmra.mxu0 %v444
      %v472 = vpop.f32.mrf.mxu0
      %v473 = vadd.f32 0.0, %v472
      %474 = vmatmul.f32.gmra.mxu0 %v447
      %v475 = vpop.f32.mrf.mxu0
      %v476 = vadd.f32 0.0, %v475
      %477 = vdwg.mxu0
      %478 = vrot.lane.b32.xlu0 %v338, 120
      %v479 = vpop.permute.xlu0 %478
      %480 = vrot.lane.b32.xlu0 %v341, 120
      %v481 = vpop.permute.xlu0 %480
      %482 = vrot.lane.b32.xlu0 %v344, 120
      %v483 = vpop.permute.xlu0 %482
      %484 = vrot.lane.b32.xlu0 %v338, 88
      %v485 = vpop.permute.xlu0 %484
      %486 = vrot.lane.b32.xlu0 %v341, 88
      %v487 = vpop.permute.xlu0 %486
      %488 = vrot.lane.b32.xlu0 %v344, 88
      %v489 = vpop.permute.xlu0 %488
      %v490 = vsel %vm355, %v479, 0
      %v492 = vsel %vm355, %v481, 0
      %v494 = vsel %vm355, %v483, 0
      %v496 = vsel %vm355, %v485, 0
      %v498 = vsel %vm355, %v487, 0
      %v500 = vsel %vm355, %v489, 0
      %502 = vmatpush.xpose.msra.mxu0 0.0
      %503 = vmatpush.xpose.msra.mxu0 0.0
      %504 = vmatpush.xpose.msra.mxu0 0.0
      %505 = vmatpush.xpose.msra.mxu0 0.0
      %506 = vmatpush.xpose.msra.mxu0 0.0
      %507 = vmatpush.xpose.msra.mxu0 0.0
      %508 = vmatpush.xpose.msra.mxu0 0.0
      %509 = vmatpush.xpose.msra.mxu0 0.0
      %510 = vmatpush.xpose.msra.mxu0 0.0
      %511 = vmatpush.xpose.msra.mxu0 0.0
      %512 = vmatpush.xpose.msra.mxu0 0.0
      %513 = vmatpush.xpose.msra.mxu0 0.0
      %514 = vmatpush.xpose.msra.mxu0 0.0
      %515 = vmatpush.xpose.msra.mxu0 %v500
      %516 = vmatpush.xpose.msra.mxu0 %v498
      %517 = vmatpush.xpose.msra.mxu0 %v496
      %518 = vmatmul.f32.gmra.mxu0 %v490
      %v519 = vpop.f32.mrf.mxu0
      %v520 = vadd.f32 0.0, %v519
      %521 = vmatmul.f32.gmra.mxu0 %v492
      %v522 = vpop.f32.mrf.mxu0
      %v523 = vadd.f32 0.0, %v522
      %524 = vmatmul.f32.gmra.mxu0 %v494
      %v525 = vpop.f32.mrf.mxu0
      %v526 = vadd.f32 0.0, %v525
      %527 = vdwg.mxu0
      %v528 = vmul.f32 %v520, %v255
      %v529 = vmul.f32 %v523, %v256
      %v530 = vmul.f32 %v526, %v257
      %v531 = vsel %vm397, %v528, -inf
      %532 = vmax.xlane.f32.xlu0 %v531
      %v533 = vpop.xlane.xlu0 %532
      %v534 = vsel %vm397, %v529, -inf
      %535 = vmax.xlane.f32.xlu0 %v534
      %v536 = vpop.xlane.xlu0 %535
      %v537 = vsel %vm404, %v530, -inf
      %538 = vmax.xlane.f32.xlu0 %v537
      %v539 = vpop.xlane.xlu0 %538
      %v540 = vsub.f32 %v528, %v533
      %v541 = vsub.f32 %v529, %v536
      %v542 = vsub.f32 %v530, %v539
      %v543 = vmul.f32 %v540, 1.442695
      %v544 = vpow.pop %v543
      %v545 = vmul.f32 %v541, 1.442695
      %v546 = vpow.pop %v545
      %v547 = vmul.f32 %v542, 1.442695
      %v548 = vpow.pop %v547
      %v549 = vsel %vm397, %v544, 0.0
      %550 = vadd.xlane.f32.xlu0 %v549
      %v551 = vpop.xlane.xlu0 %550
      %v552 = vsel %vm397, %v546, 0.0
      %553 = vadd.xlane.f32.xlu0 %v552
      %v554 = vpop.xlane.xlu0 %553
      %v555 = vsel %vm404, %v548, 0.0
      %556 = vadd.xlane.f32.xlu0 %v555
      %v557 = vpop.xlane.xlu0 %556
      %v558 = vrcp.pop %v551
      %v559 = vrcp.pop %v554
      %v560 = vrcp.pop %v557
      %v561 = vmul.f32 %v544, %v558
      %v562 = vmul.f32 %v546, %v559
      %v563 = vmul.f32 %v548, %v560
      %564 = vrot.lane.b32.xlu0 %v338, 56
      %v565 = vpop.permute.xlu0 %564
      %566 = vrot.lane.b32.xlu0 %v341, 56
      %v567 = vpop.permute.xlu0 %566
      %568 = vrot.lane.b32.xlu0 %v344, 56
      %v569 = vpop.permute.xlu0 %568
      %v573 = vsel %vm397, %v561, 0
      %v576 = vsel %vm397, %v562, 0
      %v579 = vsel %vm397, %v563, 0
      %v581 = vsel %vm449, %v569, 0
      %583 = vmatpush.msra.mxu0 0.0
      %584 = vmatpush.msra.mxu0 0.0
      %585 = vmatpush.msra.mxu0 0.0
      %586 = vmatpush.msra.mxu0 0.0
      %587 = vmatpush.msra.mxu0 0.0
      %588 = vmatpush.msra.mxu0 0.0
      %589 = vmatpush.msra.mxu0 0.0
      %590 = vmatpush.msra.mxu0 0.0
      %591 = vmatpush.msra.mxu0 0.0
      %592 = vmatpush.msra.mxu0 0.0
      %593 = vmatpush.msra.mxu0 0.0
      %594 = vmatpush.msra.mxu0 0.0
      %595 = vmatpush.msra.mxu0 0.0
      %596 = vmatpush.msra.mxu0 %v581
      %597 = vmatpush.msra.mxu0 %v567
      %598 = vmatpush.msra.mxu0 %v565
      %599 = vmatmul.f32.gmra.mxu0 %v573
      %v600 = vpop.f32.mrf.mxu0
      %v601 = vadd.f32 0.0, %v600
      %602 = vmatmul.f32.gmra.mxu0 %v576
      %v603 = vpop.f32.mrf.mxu0
      %v604 = vadd.f32 0.0, %v603
      %605 = vmatmul.f32.gmra.mxu0 %v579
      %v606 = vpop.f32.mrf.mxu0
      %v607 = vadd.f32 0.0, %v606
      %608 = vdwg.mxu0
      %609 = vrot.lane.b32.xlu0 %v338, 112
      %v610 = vpop.permute.xlu0 %609
      %611 = vrot.lane.b32.xlu0 %v341, 112
      %v612 = vpop.permute.xlu0 %611
      %613 = vrot.lane.b32.xlu0 %v344, 112
      %v614 = vpop.permute.xlu0 %613
      %615 = vrot.lane.b32.xlu0 %v338, 80
      %v616 = vpop.permute.xlu0 %615
      %617 = vrot.lane.b32.xlu0 %v341, 80
      %v618 = vpop.permute.xlu0 %617
      %619 = vrot.lane.b32.xlu0 %v344, 80
      %v620 = vpop.permute.xlu0 %619
      %v621 = vsel %vm355, %v610, 0
      %v623 = vsel %vm355, %v612, 0
      %v625 = vsel %vm355, %v614, 0
      %v627 = vsel %vm355, %v616, 0
      %v629 = vsel %vm355, %v618, 0
      %v631 = vsel %vm355, %v620, 0
      %633 = vmatpush.xpose.msra.mxu0 0.0
      %634 = vmatpush.xpose.msra.mxu0 0.0
      %635 = vmatpush.xpose.msra.mxu0 0.0
      %636 = vmatpush.xpose.msra.mxu0 0.0
      %637 = vmatpush.xpose.msra.mxu0 0.0
      %638 = vmatpush.xpose.msra.mxu0 0.0
      %639 = vmatpush.xpose.msra.mxu0 0.0
      %640 = vmatpush.xpose.msra.mxu0 0.0
      %641 = vmatpush.xpose.msra.mxu0 0.0
      %642 = vmatpush.xpose.msra.mxu0 0.0
      %643 = vmatpush.xpose.msra.mxu0 0.0
      %644 = vmatpush.xpose.msra.mxu0 0.0
      %645 = vmatpush.xpose.msra.mxu0 0.0
      %646 = vmatpush.xpose.msra.mxu0 %v631
      %647 = vmatpush.xpose.msra.mxu0 %v629
      %648 = vmatpush.xpose.msra.mxu0 %v627
      %649 = vmatmul.f32.gmra.mxu0 %v621
      %v650 = vpop.f32.mrf.mxu0
      %v651 = vadd.f32 0.0, %v650
      %652 = vmatmul.f32.gmra.mxu0 %v623
      %v653 = vpop.f32.mrf.mxu0
      %v654 = vadd.f32 0.0, %v653
      %655 = vmatmul.f32.gmra.mxu0 %v625
      %v656 = vpop.f32.mrf.mxu0
      %v657 = vadd.f32 0.0, %v656
      %658 = vdwg.mxu0
      %v659 = vmul.f32 %v651, %v255
      %v660 = vmul.f32 %v654, %v256
      %v661 = vmul.f32 %v657, %v257
      %v662 = vsel %vm397, %v659, -inf
      %663 = vmax.xlane.f32.xlu0 %v662
      %v664 = vpop.xlane.xlu0 %663
      %v665 = vsel %vm397, %v660, -inf
      %666 = vmax.xlane.f32.xlu0 %v665
      %v667 = vpop.xlane.xlu0 %666
      %v668 = vsel %vm404, %v661, -inf
      %669 = vmax.xlane.f32.xlu0 %v668
      %v670 = vpop.xlane.xlu0 %669
      %v671 = vsub.f32 %v659, %v664
      %v672 = vsub.f32 %v660, %v667
      %v673 = vsub.f32 %v661, %v670
      %v674 = vmul.f32 %v671, 1.442695
      %v675 = vpow.pop %v674
      %v676 = vmul.f32 %v672, 1.442695
      %v677 = vpow.pop %v676
      %v678 = vmul.f32 %v673, 1.442695
      %v679 = vpow.pop %v678
      %v680 = vsel %vm397, %v675, 0.0
      %681 = vadd.xlane.f32.xlu0 %v680
      %v682 = vpop.xlane.xlu0 %681
      %v683 = vsel %vm397, %v677, 0.0
      %684 = vadd.xlane.f32.xlu0 %v683
      %v685 = vpop.xlane.xlu0 %684
      %v686 = vsel %vm404, %v679, 0.0
      %687 = vadd.xlane.f32.xlu0 %v686
      %v688 = vpop.xlane.xlu0 %687
      %v689 = vrcp.pop %v682
      %v690 = vrcp.pop %v685
      %v691 = vrcp.pop %v688
      %v692 = vmul.f32 %v675, %v689
      %v693 = vmul.f32 %v677, %v690
      %v694 = vmul.f32 %v679, %v691
      %695 = vrot.lane.b32.xlu0 %v338, 48
      %v696 = vpop.permute.xlu0 %695
      %697 = vrot.lane.b32.xlu0 %v341, 48
      %v698 = vpop.permute.xlu0 %697
      %699 = vrot.lane.b32.xlu0 %v344, 48
      %v700 = vpop.permute.xlu0 %699
      %v704 = vsel %vm397, %v692, 0
      %v707 = vsel %vm397, %v693, 0
      %v710 = vsel %vm397, %v694, 0
      %v712 = vsel %vm449, %v700, 0
      %714 = vmatpush.msra.mxu0 0.0
      %715 = vmatpush.msra.mxu0 0.0
      %716 = vmatpush.msra.mxu0 0.0
      %717 = vmatpush.msra.mxu0 0.0
      %718 = vmatpush.msra.mxu0 0.0
      %719 = vmatpush.msra.mxu0 0.0
      %720 = vmatpush.msra.mxu0 0.0
      %721 = vmatpush.msra.mxu0 0.0
      %722 = vmatpush.msra.mxu0 0.0
      %723 = vmatpush.msra.mxu0 0.0
      %724 = vmatpush.msra.mxu0 0.0
      %725 = vmatpush.msra.mxu0 0.0
      %726 = vmatpush.msra.mxu0 0.0
      %727 = vmatpush.msra.mxu0 %v712
      %728 = vmatpush.msra.mxu0 %v698
      %729 = vmatpush.msra.mxu0 %v696
      %730 = vmatmul.f32.gmra.mxu0 %v704
      %v731 = vpop.f32.mrf.mxu0
      %v732 = vadd.f32 0.0, %v731
      %733 = vmatmul.f32.gmra.mxu0 %v707
      %v734 = vpop.f32.mrf.mxu0
      %v735 = vadd.f32 0.0, %v734
      %736 = vmatmul.f32.gmra.mxu0 %v710
      %v737 = vpop.f32.mrf.mxu0
      %v738 = vadd.f32 0.0, %v737
      %739 = vdwg.mxu0
      %740 = vrot.lane.b32.xlu0 %v338, 104
      %v741 = vpop.permute.xlu0 %740
      %742 = vrot.lane.b32.xlu0 %v341, 104
      %v743 = vpop.permute.xlu0 %742
      %744 = vrot.lane.b32.xlu0 %v344, 104
      %v745 = vpop.permute.xlu0 %744
      %746 = vrot.lane.b32.xlu0 %v338, 72
      %v747 = vpop.permute.xlu0 %746
      %748 = vrot.lane.b32.xlu0 %v341, 72
      %v749 = vpop.permute.xlu0 %748
      %750 = vrot.lane.b32.xlu0 %v344, 72
      %v751 = vpop.permute.xlu0 %750
      %v752 = vsel %vm355, %v741, 0
      %v754 = vsel %vm355, %v743, 0
      %v756 = vsel %vm355, %v745, 0
      %v758 = vsel %vm355, %v747, 0
      %v760 = vsel %vm355, %v749, 0
      %v762 = vsel %vm355, %v751, 0
      %764 = vmatpush.xpose.msra.mxu0 0.0
      %765 = vmatpush.xpose.msra.mxu0 0.0
      %766 = vmatpush.xpose.msra.mxu0 0.0
      %767 = vmatpush.xpose.msra.mxu0 0.0
      %768 = vmatpush.xpose.msra.mxu0 0.0
      %769 = vmatpush.xpose.msra.mxu0 0.0
      %770 = vmatpush.xpose.msra.mxu0 0.0
      %771 = vmatpush.xpose.msra.mxu0 0.0
      %772 = vmatpush.xpose.msra.mxu0 0.0
      %773 = vmatpush.xpose.msra.mxu0 0.0
      %774 = vmatpush.xpose.msra.mxu0 0.0
      %775 = vmatpush.xpose.msra.mxu0 0.0
      %776 = vmatpush.xpose.msra.mxu0 0.0
      %777 = vmatpush.xpose.msra.mxu0 %v762
      %778 = vmatpush.xpose.msra.mxu0 %v760
      %779 = vmatpush.xpose.msra.mxu0 %v758
      %780 = vmatmul.f32.gmra.mxu0 %v752
      %v781 = vpop.f32.mrf.mxu0
      %v782 = vadd.f32 0.0, %v781
      %783 = vmatmul.f32.gmra.mxu0 %v754
      %v784 = vpop.f32.mrf.mxu0
      %v785 = vadd.f32 0.0, %v784
      %786 = vmatmul.f32.gmra.mxu0 %v756
      %v787 = vpop.f32.mrf.mxu0
      %v788 = vadd.f32 0.0, %v787
      %789 = vdwg.mxu0
      %v790 = vmul.f32 %v782, %v255
      %v791 = vmul.f32 %v785, %v256
      %v792 = vmul.f32 %v788, %v257
      %v793 = vsel %vm397, %v790, -inf
      %794 = vmax.xlane.f32.xlu0 %v793
      %v795 = vpop.xlane.xlu0 %794
      %v796 = vsel %vm397, %v791, -inf
      %797 = vmax.xlane.f32.xlu0 %v796
      %v798 = vpop.xlane.xlu0 %797
      %v799 = vsel %vm404, %v792, -inf
      %800 = vmax.xlane.f32.xlu0 %v799
      %v801 = vpop.xlane.xlu0 %800
      %v802 = vsub.f32 %v790, %v795
      %v803 = vsub.f32 %v791, %v798
      %v804 = vsub.f32 %v792, %v801
      %v805 = vmul.f32 %v802, 1.442695
      %v806 = vpow.pop %v805
      %v807 = vmul.f32 %v803, 1.442695
      %v808 = vpow.pop %v807
      %v809 = vmul.f32 %v804, 1.442695
      %v810 = vpow.pop %v809
      %v811 = vsel %vm397, %v806, 0.0
      %812 = vadd.xlane.f32.xlu0 %v811
      %v813 = vpop.xlane.xlu0 %812
      %v814 = vsel %vm397, %v808, 0.0
      %815 = vadd.xlane.f32.xlu0 %v814
      %v816 = vpop.xlane.xlu0 %815
      %v817 = vsel %vm404, %v810, 0.0
      %818 = vadd.xlane.f32.xlu0 %v817
      %v819 = vpop.xlane.xlu0 %818
      %v820 = vrcp.pop %v813
      %v821 = vrcp.pop %v816
      %v822 = vrcp.pop %v819
      %v823 = vmul.f32 %v806, %v820
      %v824 = vmul.f32 %v808, %v821
      %v825 = vmul.f32 %v810, %v822
      %826 = vrot.lane.b32.xlu0 %v338, 40
      %v827 = vpop.permute.xlu0 %826
      %828 = vrot.lane.b32.xlu0 %v341, 40
      %v829 = vpop.permute.xlu0 %828
      %830 = vrot.lane.b32.xlu0 %v344, 40
      %v831 = vpop.permute.xlu0 %830
      %v835 = vsel %vm397, %v823, 0
      %v838 = vsel %vm397, %v824, 0
      %v841 = vsel %vm397, %v825, 0
      %v843 = vsel %vm449, %v831, 0
      %845 = vmatpush.msra.mxu0 0.0
      %846 = vmatpush.msra.mxu0 0.0
      %847 = vmatpush.msra.mxu0 0.0
      %848 = vmatpush.msra.mxu0 0.0
      %849 = vmatpush.msra.mxu0 0.0
      %850 = vmatpush.msra.mxu0 0.0
      %851 = vmatpush.msra.mxu0 0.0
      %852 = vmatpush.msra.mxu0 0.0
      %853 = vmatpush.msra.mxu0 0.0
      %854 = vmatpush.msra.mxu0 0.0
      %855 = vmatpush.msra.mxu0 0.0
      %856 = vmatpush.msra.mxu0 0.0
      %857 = vmatpush.msra.mxu0 0.0
      %858 = vmatpush.msra.mxu0 %v843
      %859 = vmatpush.msra.mxu0 %v829
      %860 = vmatpush.msra.mxu0 %v827
      %861 = vmatmul.f32.gmra.mxu0 %v835
      %v862 = vpop.f32.mrf.mxu0
      %v863 = vadd.f32 0.0, %v862
      %864 = vmatmul.f32.gmra.mxu0 %v838
      %v865 = vpop.f32.mrf.mxu0
      %v866 = vadd.f32 0.0, %v865
      %867 = vmatmul.f32.gmra.mxu0 %v841
      %v868 = vpop.f32.mrf.mxu0
      %v869 = vadd.f32 0.0, %v868
      %870 = vdwg.mxu0
      %874 = vrot.lane.b32.xlu0 %v601, 8
      %v875 = vpop.permute.xlu0 %874
      %876 = vrot.lane.b32.xlu0 %v604, 8
      %v877 = vpop.permute.xlu0 %876
      %878 = vrot.lane.b32.xlu0 %v607, 8
      %v879 = vpop.permute.xlu0 %878
      %886 = vrot.lane.b32.xlu0 %v732, 16
      %v887 = vpop.permute.xlu0 %886
      %888 = vrot.lane.b32.xlu0 %v735, 16
      %v889 = vpop.permute.xlu0 %888
      %890 = vrot.lane.b32.xlu0 %v738, 16
      %v891 = vpop.permute.xlu0 %890
      %898 = vrot.lane.b32.xlu0 %v863, 24
      %v899 = vpop.permute.xlu0 %898
      %900 = vrot.lane.b32.xlu0 %v866, 24
      %v901 = vpop.permute.xlu0 %900
      %902 = vrot.lane.b32.xlu0 %v869, 24
      %v903 = vpop.permute.xlu0 %902
      %v907 = vsel %vm355, %v470, %v875
      %v908 = vsel %vm355, %v473, %v877
      %v909 = vsel %vm355, %v476, %v879
      %vm910 = vcmask 130048
      %v911 = vsel %vm910, %v907, %v887
      %v912 = vsel %vm910, %v908, %v889
      %v913 = vsel %vm910, %v909, %v891
      %vm914 = vcmask 195584
      %v915 = vsel %vm914, %v911, %v899
      %v916 = vsel %vm914, %v912, %v901
      %v917 = vsel %vm914, %v913, %v903
      %v918 = vld [vmem:[%s4] sm:$0xff]
      %v919 = vld [vmem:[%s4 + $0x8] sm:$0xff]
      %v920 = vld [vmem:[%s4 + $0x10] sm:$0xff]
      %v921 = vld [vmem:[%s4 + $0x18] sm:$0xff]
      %v922 = vld [vmem:[%s5] sm:$0x1]
      %v924 = vperm.slane %v922, 0
      %v927 = vsel %vm274, %v915, 0
      %v930 = vsel %vm274, %v916, 0
      %v933 = vsel %vm274, %v917, 0
      %v936 = vsel %vm274, %v918, 0
      %v939 = vsel %vm274, %v919, 0
      %v942 = vsel %vm274, %v920, 0
      %v945 = vsel %vm274, %v921, 0
      %947 = vmatpush.xpose.msra.mxu0 0.0
      %948 = vmatpush.xpose.msra.mxu0 0.0
      %949 = vmatpush.xpose.msra.mxu0 0.0
      %950 = vmatpush.xpose.msra.mxu0 0.0
      %951 = vmatpush.xpose.msra.mxu0 0.0
      %952 = vmatpush.xpose.msra.mxu0 0.0
      %953 = vmatpush.xpose.msra.mxu0 0.0
      %954 = vmatpush.xpose.msra.mxu0 0.0
      %955 = vmatpush.xpose.msra.mxu0 0.0
      %956 = vmatpush.xpose.msra.mxu0 0.0
      %957 = vmatpush.xpose.msra.mxu0 0.0
      %958 = vmatpush.xpose.msra.mxu0 0.0
      %959 = vmatpush.xpose.msra.mxu0 %v945
      %960 = vmatpush.xpose.msra.mxu0 %v942
      %961 = vmatpush.xpose.msra.mxu0 %v939
      %962 = vmatpush.xpose.msra.mxu0 %v936
      %963 = vmatmul.f32.gmra.mxu0 %v927
      %v964 = vpop.f32.mrf.mxu0
      %v965 = vadd.f32 %v924, %v964
      %966 = vmatmul.f32.gmra.mxu0 %v930
      %v967 = vpop.f32.mrf.mxu0
      %v968 = vadd.f32 %v924, %v967
      %969 = vmatmul.f32.gmra.mxu0 %v933
      %v970 = vpop.f32.mrf.mxu0
      %v971 = vadd.f32 %v924, %v970
      %972 = vdwg.mxu0
      %973 = vst.msk [vmem:[%s251] sm:$0xff] %vm274, %v965
      %974 = vst.msk [vmem:[%s251 + $0x8] sm:$0xff] %vm274, %v968
      %vm975 = vcmask 253952
      %976 = vst.msk [vmem:[%s251 + $0x10] sm:$0x1] %vm975, %v971
      %p977 = scmp.lt.s32.totalorder %s17, 1
      %s978 = scalar_select %p977, %s17, 1
      %s979 = smul.addr %s978, 3
      %s980 = smul.addr %s979, 8
      %s981 = scalar_lea.vmem %s6, %s980
      // Predicated region
      $region45: #{tpu_custom_call.1} parent=43 // pred_check
        %p982 = pneg %p166
      $region46: #{tpu_custom_call.1} parent=43 // pred_check_branch
        %984 = sbr.rel (%p982) target = $region48
      $region47: #{tpu_custom_call.1} parent=43 // pred_region
        _
      $region48: #{tpu_custom_call.1} parent=43 // pred_fallthru
        _
    $region44: #{tpu_custom_call.1} parent=5 // pred_fallthru
      _
    %p985 = scmp.le.s32.totalorder 2, %s12
    // Predicated region
    $region49: #{tpu_custom_call.1} parent=5 // pred_check
      %p986 = pneg %p985
    $region50: #{tpu_custom_call.1} parent=5 // pred_check_branch
      %988 = sbr.rel (%p986) target = $region52
    $region51: #{tpu_custom_call.1} parent=5 // pred_region
      %s989 = ssub.s32 %s12, 2
      // Predicated region
      $region53: #{tpu_custom_call.1} parent=51 // pred_check
        %p990 = pneg %p172
      $region54: #{tpu_custom_call.1} parent=51 // pred_check_branch
        %992 = sbr.rel (%p990) target = $region56
      $region55: #{tpu_custom_call.1} parent=51 // pred_region
        %p993 = scmp.lt.s32.totalorder %s18, 1
        %s994 = scalar_select %p993, %s18, 1
        %s995 = smul.addr %s994, 3
        %s996 = smul.addr %s995, 8
        %s997 = scalar_lea.vmem %s6, %s996
      $region56: #{tpu_custom_call.1} parent=51 // pred_fallthru
        _
    $region52: #{tpu_custom_call.1} parent=5 // pred_fallthru
      _
  $region6: #{tpu_custom_call.1} parent=0 // loop_footer
    %s16 = sadd.s32 1, %s12
  $region7: #{tpu_custom_call.1} parent=0 // loop_footer_branch
    %11 = sbr.rel target = $region3
  $region8: #{tpu_custom_call.1} parent=0 // loop_exit
    _

</llo_original>
